<compile_context>
chip_gen: v7x
topology: tpu7x:2x2x1
jax: 0.10.0
libtpu: 0.0.40
codegen_flags: <defaults>
</compile_context>

<pallas_src>
import functools

import jax
import jax.numpy as jnp
from jax import lax
from jax.experimental import pallas as pl
from jax.experimental.pallas import tpu as pltpu


def _gp_rows_kernel(alpha_ref, dt_ref, df_ref, w1_ref, w2t_ref, rowgp_ref,
                    *, C, HW):
    """Per-row gradient-penalty partial sums for one batch tile."""
    # interpolates = alpha * code_true + (1 - alpha) * code_false
    alpha = alpha_ref[...]                                   # (bm, 1) f32
    # codes arrive in their native dtype (half the DMA bytes for bf16 inputs);
    # cast once after load (v5e has no bf16 VPU, f32 math is safe everywhere).
    dt = dt_ref[...].astype(jnp.float32)                     # (bm, D)
    df = df_ref[...].astype(jnp.float32)                     # (bm, D)
    x = alpha * dt + (1.0 - alpha) * df                      # (bm, D)

    w1 = w1_ref[...].astype(jnp.float32)                     # (D, H1)
    w2t = w2t_ref[...].astype(jnp.float32)                   # (1, H1)

    # forward through synthetic discriminator: pred = tanh(x @ W1) @ W2
    h = jnp.tanh(jnp.dot(x, w1,
                         preferred_element_type=jnp.float32))  # (bm, H1)

    # analytic grad of sum(pred) wrt x:  g = ((1 - h^2) * W2^T) @ W1^T
    # Contract W1's H1 axis directly (transposed operand is free on the MXU),
    # so no separate W1^T copy is ever DMA'd or held in VMEM.
    dh = (1.0 - h * h) * w2t                                 # (bm, H1)
    g = lax.dot_general(dh, w1,
                        dimension_numbers=(((1,), (1,)), ((), ())),
                        preferred_element_type=jnp.float32)  # (bm, D)

    # slopes = L2 norm over the channel dim (channel-major flat layout).
    # HW is a multiple of 128 for the shapes of interest, so every slice is
    # lane-tile aligned and this stays pure in-register VPU FMA.
    bm = g.shape[0]
    acc = jnp.zeros((bm, HW), jnp.float32)
    for c in range(C):                                       # static unroll, C small
        gc = g[:, c * HW:(c + 1) * HW]
        acc = acc + gc * gc
    slopes = jnp.sqrt(acc)                                   # (bm, H*W)

    rowgp_ref[...] = jnp.sum((slopes - 1.0) ** 2, axis=1, keepdims=True)


def wadv_gp_loss(pred_true, pred_false, code_true, code_false,
                 w1, w2, alpha, weight_gp, *, bm=8):
    """Returns (loss, wloss, gp), each a (1, 1) float32 array."""
    B, C, H, W = code_true.shape
    D = C * H * W
    HW = H * W
    H1 = w1.shape[1]

    # Wasserstein term: O(B) scalar work -> plain JAX, keeps lane-width-1
    # blocks and tiny cross-sublane reduces out of the kernel.
    wloss = (-jnp.mean(pred_true.astype(jnp.float32))
             + jnp.mean(pred_false.astype(jnp.float32)))

    # flatten NCHW channel-major; keep native dtype (no f32 up-cast in HBM).
    dt = code_true.reshape(B, D)
    df = code_false.reshape(B, D)
    alpha2 = alpha.reshape(B, 1).astype(jnp.float32)
    w2t = w2.astype(jnp.float32).reshape(H1, 1).T            # (1, H1)

    # pad batch to a sublane-aligned tile; padded rows are sliced off below.
    n_tiles = pl.cdiv(B, bm)
    Bp = n_tiles * bm
    if Bp != B:
        pad = Bp - B
        dt = jnp.pad(dt, ((0, pad), (0, 0)))
        df = jnp.pad(df, ((0, pad), (0, 0)))
        alpha2 = jnp.pad(alpha2, ((0, pad), (0, 0)))

    kernel = functools.partial(_gp_rows_kernel, C=C, HW=HW)

    grid_spec = pltpu.PrefetchScalarGridSpec(
        num_scalar_prefetch=0,
        grid=(n_tiles,),
        in_specs=[
            pl.BlockSpec((bm, 1), lambda i: (i, 0)),     # alpha
            pl.BlockSpec((bm, D), lambda i: (i, 0)),     # code_true (flat)
            pl.BlockSpec((bm, D), lambda i: (i, 0)),     # code_false (flat)
            pl.BlockSpec((D, H1), lambda i: (0, 0)),     # W1 (same block -> stays resident)
            pl.BlockSpec((1, H1), lambda i: (0, 0)),     # W2^T
        ],
        out_specs=pl.BlockSpec((bm, 1), lambda i: (i, 0)),
    )

    row_gp = pl.pallas_call(
        kernel,
        grid_spec=grid_spec,
        out_shape=jax.ShapeDtypeStruct((Bp, 1), jnp.float32),
        compiler_params=pltpu.CompilerParams(
            # batch tiles are independent -> shards across v7x's 2 TensorCores
            dimension_semantics=("parallel",),
            # explicit scoped-VMEM ceiling, safe on v5e/v6e/v7x; the tiles
            # above fit well under it even with default double buffering.
            vmem_limit_bytes=32 * 1024 * 1024),
    )(alpha2, dt, df, w1, w2t)

    gp = jnp.sum(row_gp[:B, 0]) / (B * HW)
    loss = wloss + weight_gp * gp
    return (loss.reshape(1, 1), wloss.reshape(1, 1), gp.reshape(1, 1))


def _reference(pred_true, pred_false, code_true, code_false, w1, w2, alpha,
               weight_gp):
    """Pure-JAX reference mirroring the PyTorch semantics (uses jax.vjp)."""
    B, C, H, W = code_true.shape
    wloss = -jnp.mean(pred_true) + jnp.mean(pred_false)

    a = alpha.reshape(B, 1, 1, 1)
    interp = a * code_true + (1.0 - a) * code_false

    def predict(x):
        return jnp.tanh(x.reshape(B, -1) @ w1) @ w2      # (B, 1)

    pred, vjp = jax.vjp(predict, interp)
    (grads,) = vjp(jnp.ones_like(pred))                   # (B, C, H, W)
    slopes = jnp.linalg.norm(grads, axis=1)               # (B, H, W)
    gp = jnp.mean((slopes - 1.0) ** 2)
    loss = wloss + weight_gp * gp
    return loss, wloss, gp


if __name__ == "__main__":
    B, C, H, W = 2, 4, 16, 16
    D = C * H * W
    H1 = 32                      # hidden width of synthetic discriminator
    weight_gp = 10.0

    key = jax.random.PRNGKey(0)
    k_pt, k_pf, k_ct, k_cf, k_w1, k_w2, k_a = jax.random.split(key, 7)

    pred_true = jax.random.normal(k_pt, (B, 1), jnp.float32)
    pred_false = jax.random.normal(k_pf, (B, 1), jnp.float32)
    code_true = jax.random.normal(k_ct, (B, C, H, W), jnp.float32)
    code_false = jax.random.normal(k_cf, (B, C, H, W), jnp.float32)

    # deterministic synthetic discriminator parameters
    w1 = jax.random.normal(k_w1, (D, H1), jnp.float32) * 0.05
    w2 = jax.random.normal(k_w2, (H1, 1), jnp.float32) * 0.05

    # alpha ~ U[0,1)  (stands in for torch.rand((B,1,1,1)))
    alpha = jax.random.uniform(k_a, (B, 1), jnp.float32)

    loss, wloss, gp = wadv_gp_loss(pred_true, pred_false, code_true,
                                   code_false, w1, w2, alpha, weight_gp)
    jax.block_until_ready((loss, wloss, gp))

    ref_loss, ref_wloss, ref_gp = _reference(pred_true, pred_false, code_true,
                                             code_false, w1, w2, alpha,
                                             weight_gp)
    assert jnp.allclose(loss[0, 0], ref_loss, atol=1e-3, rtol=1e-3)
    assert jnp.allclose(wloss[0, 0], ref_wloss, atol=1e-3, rtol=1e-3)
    assert jnp.allclose(gp[0, 0], ref_gp, atol=1e-3, rtol=1e-3)

    print("KERNEL_OK")
</pallas_src>

<mosaic_0001>
module attributes {stable_mosaic.version = 11 : i64} {
  func.func @_gp_rows_kernel(%arg0: i32, %arg1: memref<8x1xf32, #tpu.memory_space<vmem>>, %arg2: memref<8x1024xf32, #tpu.memory_space<vmem>>, %arg3: memref<8x1024xf32, #tpu.memory_space<vmem>>, %arg4: memref<1024x32xf32, #tpu.memory_space<vmem>>, %arg5: memref<1x32xf32, #tpu.memory_space<vmem>>, %arg6: memref<8x1xf32, #tpu.memory_space<vmem>>) attributes {dimension_semantics = [#tpu.dimension_semantics<parallel>], iteration_bounds = array<i64: 1>, scalar_prefetch = 0 : i64, scratch_operands = 0 : i64, tpu.core_type = #tpu.core_type<tc>, window_params = [{transform_indices = @transform_0, window_bounds = array<i64: 8, 1>}, {transform_indices = @transform_1, window_bounds = array<i64: 8, 1024>}, {transform_indices = @transform_2, window_bounds = array<i64: 8, 1024>}, {pipeline_mode = #tpu.pipeline_mode<synchronous>, transform_indices = @transform_3, window_bounds = array<i64: 1024, 32>}, {pipeline_mode = #tpu.pipeline_mode<synchronous>, transform_indices = @transform_4, window_bounds = array<i64: 1, 32>}, {transform_indices = @transform_5, window_bounds = array<i64: 8, 1>}]} {
    %c0 = arith.constant 0 : index
    %c0_0 = arith.constant 0 : index
    %0 = vector.load %arg1[%c0, %c0_0] : memref<8x1xf32, #tpu.memory_space<vmem>>, vector<8x1xf32>
    %c0_1 = arith.constant 0 : index
    %c0_2 = arith.constant 0 : index
    %1 = vector.load %arg2[%c0_1, %c0_2] : memref<8x1024xf32, #tpu.memory_space<vmem>>, vector<8x1024xf32>
    %c0_3 = arith.constant 0 : index
    %c0_4 = arith.constant 0 : index
    %2 = vector.load %arg3[%c0_3, %c0_4] : memref<8x1024xf32, #tpu.memory_space<vmem>>, vector<8x1024xf32>
    %3 = vector.broadcast %0 : vector<8x1xf32> to vector<8x1024xf32>
    %4 = arith.mulf %3, %1 : vector<8x1024xf32>
    %cst = arith.constant 1.000000e+00 : f32
    %5 = vector.broadcast %cst : f32 to vector<8x1xf32>
    %6 = arith.subf %5, %0 : vector<8x1xf32>
    %7 = vector.broadcast %6 : vector<8x1xf32> to vector<8x1024xf32>
    %8 = arith.mulf %7, %2 : vector<8x1024xf32>
    %9 = arith.addf %4, %8 : vector<8x1024xf32>
    %c0_5 = arith.constant 0 : index
    %c0_6 = arith.constant 0 : index
    %10 = vector.load %arg4[%c0_5, %c0_6] : memref<1024x32xf32, #tpu.memory_space<vmem>>, vector<1024x32xf32>
    %c0_7 = arith.constant 0 : index
    %c0_8 = arith.constant 0 : index
    %11 = vector.load %arg5[%c0_7, %c0_8] : memref<1x32xf32, #tpu.memory_space<vmem>>, vector<1x32xf32>
    %cst_9 = arith.constant dense<0.000000e+00> : vector<8x32xf32>
    %12 = tpu.matmul %9, %10, %cst_9 {dimension_numbers = #tpu.dot_dimension_numbers<[1], [0], [0], [1], [0, 0, 1, 1], [], []>} : vector<8x1024xf32>, vector<1024x32xf32>, vector<8x32xf32> -> vector<8x32xf32>
    %13 = math.tanh %12 : vector<8x32xf32>
    %14 = arith.mulf %13, %13 : vector<8x32xf32>
    %cst_10 = arith.constant 1.000000e+00 : f32
    %15 = vector.broadcast %cst_10 : f32 to vector<8x32xf32>
    %16 = arith.subf %15, %14 : vector<8x32xf32>
    %17 = vector.broadcast %11 : vector<1x32xf32> to vector<8x32xf32>
    %18 = arith.mulf %16, %17 : vector<8x32xf32>
    %cst_11 = arith.constant dense<0.000000e+00> : vector<8x1024xf32>
    %19 = tpu.matmul %18, %10, %cst_11 {dimension_numbers = #tpu.dot_dimension_numbers<[1], [1], [0], [0], [0, 0, 1, 0], [], []>} : vector<8x32xf32>, vector<1024x32xf32>, vector<8x1024xf32> -> vector<8x1024xf32>
    %cst_12 = arith.constant 0.000000e+00 : f32
    %20 = vector.broadcast %cst_12 : f32 to vector<8x256xf32>
    %21 = vector.extract_strided_slice %19 {offsets = [0, 0], sizes = [8, 256], strides = [1, 1]} : vector<8x1024xf32> to vector<8x256xf32>
    %22 = arith.mulf %21, %21 : vector<8x256xf32>
    %23 = arith.addf %20, %22 : vector<8x256xf32>
    %24 = vector.extract_strided_slice %19 {offsets = [0, 256], sizes = [8, 256], strides = [1, 1]} : vector<8x1024xf32> to vector<8x256xf32>
    %25 = arith.mulf %24, %24 : vector<8x256xf32>
    %26 = arith.addf %23, %25 : vector<8x256xf32>
    %27 = vector.extract_strided_slice %19 {offsets = [0, 512], sizes = [8, 256], strides = [1, 1]} : vector<8x1024xf32> to vector<8x256xf32>
    %28 = arith.mulf %27, %27 : vector<8x256xf32>
    %29 = arith.addf %26, %28 : vector<8x256xf32>
    %30 = vector.extract_strided_slice %19 {offsets = [0, 768], sizes = [8, 256], strides = [1, 1]} : vector<8x1024xf32> to vector<8x256xf32>
    %31 = arith.mulf %30, %30 : vector<8x256xf32>
    %32 = arith.addf %29, %31 : vector<8x256xf32>
    %33 = math.sqrt %32 : vector<8x256xf32>
    %cst_13 = arith.constant 1.000000e+00 : f32
    %34 = vector.broadcast %cst_13 : f32 to vector<8x256xf32>
    %35 = arith.subf %33, %34 : vector<8x256xf32>
    %36 = arith.mulf %35, %35 : vector<8x256xf32>
    %cst_14 = arith.constant dense<0.000000e+00> : vector<8xf32>
    %37 = vector.multi_reduction <add>, %36, %cst_14 [1] : vector<8x256xf32> to vector<8xf32>
    %38 = vector.shape_cast %37 : vector<8xf32> to vector<8x1xf32>
    %c0_15 = arith.constant 0 : index
    %c0_16 = arith.constant 0 : index
    %39 = vector.load %arg6[%c0_15, %c0_16] : memref<8x1xf32, #tpu.memory_space<vmem>>, vector<8x1xf32>
    tpu.vector_store %arg6[%c0_15, %c0_16], %38 {strides = array<i32>} : memref<8x1xf32, #tpu.memory_space<vmem>>, vector<8x1xf32>,
    return
  }
  func.func @transform_0(%arg0: i32) -> (i32, i32) {
    %c0_i32 = arith.constant 0 : i32
    %c0_i32_0 = arith.constant 0 : i32
    return %arg0, %c0_i32 : i32, i32
  }
  func.func @transform_1(%arg0: i32) -> (i32, i32) {
    %c0_i32 = arith.constant 0 : i32
    %c0_i32_0 = arith.constant 0 : i32
    return %arg0, %c0_i32 : i32, i32
  }
  func.func @transform_2(%arg0: i32) -> (i32, i32) {
    %c0_i32 = arith.constant 0 : i32
    %c0_i32_0 = arith.constant 0 : i32
    return %arg0, %c0_i32 : i32, i32
  }
  func.func @transform_3(%arg0: i32) -> (i32, i32) {
    %c0_i32 = arith.constant 0 : i32
    %c0_i32_0 = arith.constant 0 : i32
    %c0_i32_1 = arith.constant 0 : i32
    return %c0_i32, %c0_i32_0 : i32, i32
  }
  func.func @transform_4(%arg0: i32) -> (i32, i32) {
    %c0_i32 = arith.constant 0 : i32
    %c0_i32_0 = arith.constant 0 : i32
    %c0_i32_1 = arith.constant 0 : i32
    return %c0_i32, %c0_i32_0 : i32, i32
  }
  func.func @transform_5(%arg0: i32) -> (i32, i32) {
    %c0_i32 = arith.constant 0 : i32
    %c0_i32_0 = arith.constant 0 : i32
    return %arg0, %c0_i32 : i32, i32
  }
}

</mosaic_0001>

<llo_original>
// kernel: tpu_custom_call.1
$region0: #{tpu_custom_call.1}
  #allocation0 [shape = 'u32[]', space=smem, size = 0x4, offset = 0x4, fixed_abs, tag = 'smem constant byte address 0x4 - core index']
  #allocation1 [shape = 'u32[144,128]{1,0:T(1,128)}', space=vmem, size = 0x12000, scoped, tag = 'internal scratch']
  %s0 = inlined_call_operand.vmem [shape: f32[8,1], index: 0, kind: input, shape index: {}]
  %s1 = inlined_call_operand.vmem [shape: f32[8,1024], index: 1, kind: input, shape index: {}]
  %s2 = inlined_call_operand.vmem [shape: f32[8,1024], index: 2, kind: input, shape index: {}]
  %s3 = inlined_call_operand.vmem [shape: f32[1024,32], index: 3, kind: input, shape index: {}]
  %s4 = inlined_call_operand.vmem [shape: f32[1,32], index: 4, kind: input, shape index: {}]
  %s5 = inlined_call_operand.vmem [shape: f32[8,1], index: 5, kind: output, shape index: {}]
  %s6 = sld [smem:[#allocation0]]
  $region30: #{tpu_custom_call.1} parent=0
    _
  %s8 = ssub.s32 1, %s6
  %s9 = scalar_select 0, %s8, %s6
  // Predicated region
  $region2: #{tpu_custom_call.1} parent=0 // pred_check
    _
  $region3: #{tpu_custom_call.1} parent=0 // pred_check_branch
    %11 = sbr.rel (0) target = $region5
  $region4: #{tpu_custom_call.1} parent=0 // pred_region
    _
  $region5: #{tpu_custom_call.1} parent=0 // pred_fallthru
    _
  // Predicated region
  $region6: #{tpu_custom_call.1} parent=0 // pred_check
    _
  $region7: #{tpu_custom_call.1} parent=0 // pred_check_branch
    %13 = sbr.rel (0) target = $region9
  $region8: #{tpu_custom_call.1} parent=0 // pred_region
    _
  $region9: #{tpu_custom_call.1} parent=0 // pred_fallthru
    _
  // Predicated region
  $region10: #{tpu_custom_call.1} parent=0 // pred_check
    _
  $region11: #{tpu_custom_call.1} parent=0 // pred_check_branch
    %15 = sbr.rel (0) target = $region13
  $region12: #{tpu_custom_call.1} parent=0 // pred_region
    _
  $region13: #{tpu_custom_call.1} parent=0 // pred_fallthru
    _
  // Predicated region
  $region14: #{tpu_custom_call.1} parent=0 // pred_check
    _
  $region15: #{tpu_custom_call.1} parent=0 // pred_check_branch
    %17 = sbr.rel (0) target = $region17
  $region16: #{tpu_custom_call.1} parent=0 // pred_region
    _
  $region17: #{tpu_custom_call.1} parent=0 // pred_fallthru
    _
  // Predicated region
  $region18: #{tpu_custom_call.1} parent=0 // pred_check
    _
  $region19: #{tpu_custom_call.1} parent=0 // pred_check_branch
    %19 = sbr.rel (0) target = $region21
  $region20: #{tpu_custom_call.1} parent=0 // pred_region
    _
  $region21: #{tpu_custom_call.1} parent=0 // pred_fallthru
    _
  %v20 = vld [vmem:[%s0] sm:$0xff]
  %v21 = vld [vmem:[%s1] sm:$0xff]
  %v22 = vld [vmem:[%s1 + $0x8] sm:$0xff]
  %v23 = vld [vmem:[%s1 + $0x10] sm:$0xff]
  %v24 = vld [vmem:[%s1 + $0x18] sm:$0xff]
  %v25 = vld [vmem:[%s1 + $0x20] sm:$0xff]
  %v26 = vld [vmem:[%s1 + $0x28] sm:$0xff]
  %v27 = vld [vmem:[%s1 + $0x30] sm:$0xff]
  %v28 = vld [vmem:[%s1 + $0x38] sm:$0xff]
  %v29 = vld [vmem:[%s2] sm:$0xff]
  %v30 = vld [vmem:[%s2 + $0x8] sm:$0xff]
  %v31 = vld [vmem:[%s2 + $0x10] sm:$0xff]
  %v32 = vld [vmem:[%s2 + $0x18] sm:$0xff]
  %v33 = vld [vmem:[%s2 + $0x20] sm:$0xff]
  %v34 = vld [vmem:[%s2 + $0x28] sm:$0xff]
  %v35 = vld [vmem:[%s2 + $0x30] sm:$0xff]
  %v36 = vld [vmem:[%s2 + $0x38] sm:$0xff]
  %38 = vset.pattern.permute.xlu0 0
  %39 = vperm.xlu0 %38, %v20
  %v40 = vpop.permute.xlu0 %39
  %v42 = vmul.f32 %v40, %v21
  %v43 = vmul.f32 %v40, %v22
  %v44 = vmul.f32 %v40, %v23
  %v45 = vmul.f32 %v40, %v24
  %v46 = vmul.f32 %v40, %v25
  %v47 = vmul.f32 %v40, %v26
  %v48 = vmul.f32 %v40, %v27
  %v49 = vmul.f32 %v40, %v28
  %v50 = vsub.f32 1.0, %v20
  %52 = vset.pattern.permute.xlu0 0
  %53 = vperm.xlu0 %52, %v50
  %v54 = vpop.permute.xlu0 %53
  %v56 = vmul.f32 %v54, %v29
  %v57 = vmul.f32 %v54, %v30
  %v58 = vmul.f32 %v54, %v31
  %v59 = vmul.f32 %v54, %v32
  %v60 = vmul.f32 %v54, %v33
  %v61 = vmul.f32 %v54, %v34
  %v62 = vmul.f32 %v54, %v35
  %v63 = vmul.f32 %v54, %v36
  %v64 = vadd.f32 %v42, %v56
  %v65 = vadd.f32 %v43, %v57
  %v66 = vadd.f32 %v44, %v58
  %v67 = vadd.f32 %v45, %v59
  %v68 = vadd.f32 %v46, %v60
  %v69 = vadd.f32 %v47, %v61
  %v70 = vadd.f32 %v48, %v62
  %v71 = vadd.f32 %v49, %v63
  %v72 = vld [vmem:[%s3] sm:$0xff]
  %v73 = vld [vmem:[%s3 + $0x8] sm:$0xff]
  %v74 = vld [vmem:[%s3 + $0x10] sm:$0xff]
  %v75 = vld [vmem:[%s3 + $0x18] sm:$0xff]
  %v76 = vld [vmem:[%s3 + $0x20] sm:$0xff]
  %v77 = vld [vmem:[%s3 + $0x28] sm:$0xff]
  %v78 = vld [vmem:[%s3 + $0x30] sm:$0xff]
  %v79 = vld [vmem:[%s3 + $0x38] sm:$0xff]
  %v80 = vld [vmem:[%s3 + $0x40] sm:$0xff]
  %v81 = vld [vmem:[%s3 + $0x48] sm:$0xff]
  %v82 = vld [vmem:[%s3 + $0x50] sm:$0xff]
  %v83 = vld [vmem:[%s3 + $0x58] sm:$0xff]
  %v84 = vld [vmem:[%s3 + $0x60] sm:$0xff]
  %v85 = vld [vmem:[%s3 + $0x68] sm:$0xff]
  %v86 = vld [vmem:[%s3 + $0x70] sm:$0xff]
  %v87 = vld [vmem:[%s3 + $0x78] sm:$0xff]
  %v88 = vld [vmem:[%s3 + $0x80] sm:$0xff]
  %v89 = vld [vmem:[%s3 + $0x88] sm:$0xff]
  %v90 = vld [vmem:[%s3 + $0x90] sm:$0xff]
  %v91 = vld [vmem:[%s3 + $0x98] sm:$0xff]
  %v92 = vld [vmem:[%s3 + $0xa0] sm:$0xff]
  %v93 = vld [vmem:[%s3 + $0xa8] sm:$0xff]
  %v94 = vld [vmem:[%s3 + $0xb0] sm:$0xff]
  %v95 = vld [vmem:[%s3 + $0xb8] sm:$0xff]
  %v96 = vld [vmem:[%s3 + $0xc0] sm:$0xff]
  %v97 = vld [vmem:[%s3 + $0xc8] sm:$0xff]
  %v98 = vld [vmem:[%s3 + $0xd0] sm:$0xff]
  %v99 = vld [vmem:[%s3 + $0xd8] sm:$0xff]
  %v100 = vld [vmem:[%s3 + $0xe0] sm:$0xff]
  %v101 = vld [vmem:[%s3 + $0xe8] sm:$0xff]
  %v102 = vld [vmem:[%s3 + $0xf0] sm:$0xff]
  %v103 = vld [vmem:[%s3 + $0xf8] sm:$0xff]
  %v104 = vld [vmem:[%s3 + $0x100] sm:$0xff]
  %v105 = vld [vmem:[%s3 + $0x108] sm:$0xff]
  %v106 = vld [vmem:[%s3 + $0x110] sm:$0xff]
  %v107 = vld [vmem:[%s3 + $0x118] sm:$0xff]
  %v108 = vld [vmem:[%s3 + $0x120] sm:$0xff]
  %v109 = vld [vmem:[%s3 + $0x128] sm:$0xff]
  %v110 = vld [vmem:[%s3 + $0x130] sm:$0xff]
  %v111 = vld [vmem:[%s3 + $0x138] sm:$0xff]
  %v112 = vld [vmem:[%s3 + $0x140] sm:$0xff]
  %v113 = vld [vmem:[%s3 + $0x148] sm:$0xff]
  %v114 = vld [vmem:[%s3 + $0x150] sm:$0xff]
  %v115 = vld [vmem:[%s3 + $0x158] sm:$0xff]
  %v116 = vld [vmem:[%s3 + $0x160] sm:$0xff]
  %v117 = vld [vmem:[%s3 + $0x168] sm:$0xff]
  %v118 = vld [vmem:[%s3 + $0x170] sm:$0xff]
  %v119 = vld [vmem:[%s3 + $0x178] sm:$0xff]
  %v120 = vld [vmem:[%s3 + $0x180] sm:$0xff]
  %v121 = vld [vmem:[%s3 + $0x188] sm:$0xff]
  %v122 = vld [vmem:[%s3 + $0x190] sm:$0xff]
  %v123 = vld [vmem:[%s3 + $0x198] sm:$0xff]
  %v124 = vld [vmem:[%s3 + $0x1a0] sm:$0xff]
  %v125 = vld [vmem:[%s3 + $0x1a8] sm:$0xff]
  %v126 = vld [vmem:[%s3 + $0x1b0] sm:$0xff]
  %v127 = vld [vmem:[%s3 + $0x1b8] sm:$0xff]
  %v128 = vld [vmem:[%s3 + $0x1c0] sm:$0xff]
  %v129 = vld [vmem:[%s3 + $0x1c8] sm:$0xff]
  %v130 = vld [vmem:[%s3 + $0x1d0] sm:$0xff]
  %v131 = vld [vmem:[%s3 + $0x1d8] sm:$0xff]
  %v132 = vld [vmem:[%s3 + $0x1e0] sm:$0xff]
  %v133 = vld [vmem:[%s3 + $0x1e8] sm:$0xff]
  %v134 = vld [vmem:[%s3 + $0x1f0] sm:$0xff]
  %v135 = vld [vmem:[%s3 + $0x1f8] sm:$0xff]
  %v136 = vld [vmem:[%s3 + $0x200] sm:$0xff]
  %v137 = vld [vmem:[%s3 + $0x208] sm:$0xff]
  %v138 = vld [vmem:[%s3 + $0x210] sm:$0xff]
  %v139 = vld [vmem:[%s3 + $0x218] sm:$0xff]
  %v140 = vld [vmem:[%s3 + $0x220] sm:$0xff]
  %v141 = vld [vmem:[%s3 + $0x228] sm:$0xff]
  %v142 = vld [vmem:[%s3 + $0x230] sm:$0xff]
  %v143 = vld [vmem:[%s3 + $0x238] sm:$0xff]
  %v144 = vld [vmem:[%s3 + $0x240] sm:$0xff]
  %v145 = vld [vmem:[%s3 + $0x248] sm:$0xff]
  %v146 = vld [vmem:[%s3 + $0x250] sm:$0xff]
  %v147 = vld [vmem:[%s3 + $0x258] sm:$0xff]
  %v148 = vld [vmem:[%s3 + $0x260] sm:$0xff]
  %v149 = vld [vmem:[%s3 + $0x268] sm:$0xff]
  %v150 = vld [vmem:[%s3 + $0x270] sm:$0xff]
  %v151 = vld [vmem:[%s3 + $0x278] sm:$0xff]
  %v152 = vld [vmem:[%s3 + $0x280] sm:$0xff]
  %v153 = vld [vmem:[%s3 + $0x288] sm:$0xff]
  %v154 = vld [vmem:[%s3 + $0x290] sm:$0xff]
  %v155 = vld [vmem:[%s3 + $0x298] sm:$0xff]
  %v156 = vld [vmem:[%s3 + $0x2a0] sm:$0xff]
  %v157 = vld [vmem:[%s3 + $0x2a8] sm:$0xff]
  %v158 = vld [vmem:[%s3 + $0x2b0] sm:$0xff]
  %v159 = vld [vmem:[%s3 + $0x2b8] sm:$0xff]
  %v160 = vld [vmem:[%s3 + $0x2c0] sm:$0xff]
  %v161 = vld [vmem:[%s3 + $0x2c8] sm:$0xff]
  %v162 = vld [vmem:[%s3 + $0x2d0] sm:$0xff]
  %v163 = vld [vmem:[%s3 + $0x2d8] sm:$0xff]
  %v164 = vld [vmem:[%s3 + $0x2e0] sm:$0xff]
  %v165 = vld [vmem:[%s3 + $0x2e8] sm:$0xff]
  %v166 = vld [vmem:[%s3 + $0x2f0] sm:$0xff]
  %v167 = vld [vmem:[%s3 + $0x2f8] sm:$0xff]
  %v168 = vld [vmem:[%s3 + $0x300] sm:$0xff]
  %v169 = vld [vmem:[%s3 + $0x308] sm:$0xff]
  %v170 = vld [vmem:[%s3 + $0x310] sm:$0xff]
  %v171 = vld [vmem:[%s3 + $0x318] sm:$0xff]
  %v172 = vld [vmem:[%s3 + $0x320] sm:$0xff]
  %v173 = vld [vmem:[%s3 + $0x328] sm:$0xff]
  %v174 = vld [vmem:[%s3 + $0x330] sm:$0xff]
  %v175 = vld [vmem:[%s3 + $0x338] sm:$0xff]
  %v176 = vld [vmem:[%s3 + $0x340] sm:$0xff]
  %v177 = vld [vmem:[%s3 + $0x348] sm:$0xff]
  %v178 = vld [vmem:[%s3 + $0x350] sm:$0xff]
  %v179 = vld [vmem:[%s3 + $0x358] sm:$0xff]
  %v180 = vld [vmem:[%s3 + $0x360] sm:$0xff]
  %v181 = vld [vmem:[%s3 + $0x368] sm:$0xff]
  %v182 = vld [vmem:[%s3 + $0x370] sm:$0xff]
  %v183 = vld [vmem:[%s3 + $0x378] sm:$0xff]
  %v184 = vld [vmem:[%s3 + $0x380] sm:$0xff]
  %v185 = vld [vmem:[%s3 + $0x388] sm:$0xff]
  %v186 = vld [vmem:[%s3 + $0x390] sm:$0xff]
  %v187 = vld [vmem:[%s3 + $0x398] sm:$0xff]
  %v188 = vld [vmem:[%s3 + $0x3a0] sm:$0xff]
  %v189 = vld [vmem:[%s3 + $0x3a8] sm:$0xff]
  %v190 = vld [vmem:[%s3 + $0x3b0] sm:$0xff]
  %v191 = vld [vmem:[%s3 + $0x3b8] sm:$0xff]
  %v192 = vld [vmem:[%s3 + $0x3c0] sm:$0xff]
  %v193 = vld [vmem:[%s3 + $0x3c8] sm:$0xff]
  %v194 = vld [vmem:[%s3 + $0x3d0] sm:$0xff]
  %v195 = vld [vmem:[%s3 + $0x3d8] sm:$0xff]
  %v196 = vld [vmem:[%s3 + $0x3e0] sm:$0xff]
  %v197 = vld [vmem:[%s3 + $0x3e8] sm:$0xff]
  %v198 = vld [vmem:[%s3 + $0x3f0] sm:$0xff]
  %v199 = vld [vmem:[%s3 + $0x3f8] sm:$0xff]
  %v200 = vld [vmem:[%s4] sm:$0x1]
  %201 = vmatprep.subr.mxu0 0.0
  %202 = vmatpush1.msra.mxu0 %v72
  %203 = vmatprep.subr.mxu0 0.0
  %204 = vmatpush1.msra.mxu0 %v73
  %205 = vmatprep.subr.mxu0 0.0
  %206 = vmatpush1.msra.mxu0 %v74
  %207 = vmatprep.subr.mxu0 0.0
  %208 = vmatpush1.msra.mxu0 %v75
  %209 = vmatprep.subr.mxu0 0.0
  %210 = vmatpush1.msra.mxu0 %v76
  %211 = vmatprep.subr.mxu0 0.0
  %212 = vmatpush1.msra.mxu0 %v77
  %213 = vmatprep.subr.mxu0 0.0
  %214 = vmatpush1.msra.mxu0 %v78
  %215 = vmatprep.subr.mxu0 0.0
  %216 = vmatpush1.msra.mxu0 %v79
  %217 = vmatprep.subr.mxu0 0.0
  %218 = vmatpush1.msra.mxu0 %v80
  %219 = vmatprep.subr.mxu0 0.0
  %220 = vmatpush1.msra.mxu0 %v81
  %221 = vmatprep.subr.mxu0 0.0
  %222 = vmatpush1.msra.mxu0 %v82
  %223 = vmatprep.subr.mxu0 0.0
  %224 = vmatpush1.msra.mxu0 %v83
  %225 = vmatprep.subr.mxu0 0.0
  %226 = vmatpush1.msra.mxu0 %v84
  %227 = vmatprep.subr.mxu0 0.0
  %228 = vmatpush1.msra.mxu0 %v85
  %229 = vmatprep.subr.mxu0 0.0
  %230 = vmatpush1.msra.mxu0 %v86
  %231 = vmatprep.subr.mxu0 0.0
  %232 = vmatpush1.msra.mxu0 %v87
  %233 = vmatprep.subr.mxu0 0.0
  %234 = vmatpush1.msra.mxu0 %v88
  %235 = vmatprep.subr.mxu0 0.0
  %236 = vmatpush1.msra.mxu0 %v89
  %237 = vmatprep.subr.mxu0 0.0
  %238 = vmatpush1.msra.mxu0 %v90
  %239 = vmatprep.subr.mxu0 0.0
  %240 = vmatpush1.msra.mxu0 %v91
  %241 = vmatprep.subr.mxu0 0.0
  %242 = vmatpush1.msra.mxu0 %v92
  %243 = vmatprep.subr.mxu0 0.0
  %244 = vmatpush1.msra.mxu0 %v93
  %245 = vmatprep.subr.mxu0 0.0
  %246 = vmatpush1.msra.mxu0 %v94
  %247 = vmatprep.subr.mxu0 0.0
  %248 = vmatpush1.msra.mxu0 %v95
  %249 = vmatprep.subr.mxu0 0.0
  %250 = vmatpush1.msra.mxu0 %v96
  %251 = vmatprep.subr.mxu0 0.0
  %252 = vmatpush1.msra.mxu0 %v97
  %253 = vmatprep.subr.mxu0 0.0
  %254 = vmatpush1.msra.mxu0 %v98
  %255 = vmatprep.subr.mxu0 0.0
  %256 = vmatpush1.msra.mxu0 %v99
  %257 = vmatprep.subr.mxu0 0.0
  %258 = vmatpush1.msra.mxu0 %v100
  %259 = vmatprep.subr.mxu0 0.0
  %260 = vmatpush1.msra.mxu0 %v101
  %261 = vmatprep.subr.mxu0 0.0
  %262 = vmatpush1.msra.mxu0 %v102
  %263 = vmatprep.subr.mxu0 0.0
  %264 = vmatpush1.msra.mxu0 %v103
  %265 = vmatprep.mubr.f32.mxu0 %v65
  %266 = vmatmul.mubr.f32.gmra.mrb[0].mxu0 %v64
  %v267 = vpop.f32.mrb[0].mxu0
  %v268 = vadd.f32 0.0, %v267
  %v269 = vpop.f32.mrb[0].mxu0
  %270 = vdwg.mxu0
  %271 = vmatprep.subr.mxu0 0.0
  %272 = vmatpush1.msra.mxu0 %v104
  %273 = vmatprep.subr.mxu0 0.0
  %274 = vmatpush1.msra.mxu0 %v105
  %275 = vmatprep.subr.mxu0 0.0
  %276 = vmatpush1.msra.mxu0 %v106
  %277 = vmatprep.subr.mxu0 0.0
  %278 = vmatpush1.msra.mxu0 %v107
  %279 = vmatprep.subr.mxu0 0.0
  %280 = vmatpush1.msra.mxu0 %v108
  %281 = vmatprep.subr.mxu0 0.0
  %282 = vmatpush1.msra.mxu0 %v109
  %283 = vmatprep.subr.mxu0 0.0
  %284 = vmatpush1.msra.mxu0 %v110
  %285 = vmatprep.subr.mxu0 0.0
  %286 = vmatpush1.msra.mxu0 %v111
  %287 = vmatprep.subr.mxu0 0.0
  %288 = vmatpush1.msra.mxu0 %v112
  %289 = vmatprep.subr.mxu0 0.0
  %290 = vmatpush1.msra.mxu0 %v113
  %291 = vmatprep.subr.mxu0 0.0
  %292 = vmatpush1.msra.mxu0 %v114
  %293 = vmatprep.subr.mxu0 0.0
  %294 = vmatpush1.msra.mxu0 %v115
  %295 = vmatprep.subr.mxu0 0.0
  %296 = vmatpush1.msra.mxu0 %v116
  %297 = vmatprep.subr.mxu0 0.0
  %298 = vmatpush1.msra.mxu0 %v117
  %299 = vmatprep.subr.mxu0 0.0
  %300 = vmatpush1.msra.mxu0 %v118
  %301 = vmatprep.subr.mxu0 0.0
  %302 = vmatpush1.msra.mxu0 %v119
  %303 = vmatprep.subr.mxu0 0.0
  %304 = vmatpush1.msra.mxu0 %v120
  %305 = vmatprep.subr.mxu0 0.0
  %306 = vmatpush1.msra.mxu0 %v121
  %307 = vmatprep.subr.mxu0 0.0
  %308 = vmatpush1.msra.mxu0 %v122
  %309 = vmatprep.subr.mxu0 0.0
  %310 = vmatpush1.msra.mxu0 %v123
  %311 = vmatprep.subr.mxu0 0.0
  %312 = vmatpush1.msra.mxu0 %v124
  %313 = vmatprep.subr.mxu0 0.0
  %314 = vmatpush1.msra.mxu0 %v125
  %315 = vmatprep.subr.mxu0 0.0
  %316 = vmatpush1.msra.mxu0 %v126
  %317 = vmatprep.subr.mxu0 0.0
  %318 = vmatpush1.msra.mxu0 %v127
  %319 = vmatprep.subr.mxu0 0.0
  %320 = vmatpush1.msra.mxu0 %v128
  %321 = vmatprep.subr.mxu0 0.0
  %322 = vmatpush1.msra.mxu0 %v129
  %323 = vmatprep.subr.mxu0 0.0
  %324 = vmatpush1.msra.mxu0 %v130
  %325 = vmatprep.subr.mxu0 0.0
  %326 = vmatpush1.msra.mxu0 %v131
  %327 = vmatprep.subr.mxu0 0.0
  %328 = vmatpush1.msra.mxu0 %v132
  %329 = vmatprep.subr.mxu0 0.0
  %330 = vmatpush1.msra.mxu0 %v133
  %331 = vmatprep.subr.mxu0 0.0
  %332 = vmatpush1.msra.mxu0 %v134
  %333 = vmatprep.subr.mxu0 0.0
  %334 = vmatpush1.msra.mxu0 %v135
  %335 = vmatprep.mubr.f32.mxu0 %v67
  %336 = vmatmul.mubr.f32.gmra.mrb[0].mxu0 %v66
  %v337 = vpop.f32.mrb[0].mxu0
  %v338 = vadd.f32 %v268, %v337
  %v339 = vpop.f32.mrb[0].mxu0
  %340 = vdwg.mxu0
  %341 = vmatprep.subr.mxu0 0.0
  %342 = vmatpush1.msra.mxu0 %v136
  %343 = vmatprep.subr.mxu0 0.0
  %344 = vmatpush1.msra.mxu0 %v137
  %345 = vmatprep.subr.mxu0 0.0
  %346 = vmatpush1.msra.mxu0 %v138
  %347 = vmatprep.subr.mxu0 0.0
  %348 = vmatpush1.msra.mxu0 %v139
  %349 = vmatprep.subr.mxu0 0.0
  %350 = vmatpush1.msra.mxu0 %v140
  %351 = vmatprep.subr.mxu0 0.0
  %352 = vmatpush1.msra.mxu0 %v141
  %353 = vmatprep.subr.mxu0 0.0
  %354 = vmatpush1.msra.mxu0 %v142
  %355 = vmatprep.subr.mxu0 0.0
  %356 = vmatpush1.msra.mxu0 %v143
  %357 = vmatprep.subr.mxu0 0.0
  %358 = vmatpush1.msra.mxu0 %v144
  %359 = vmatprep.subr.mxu0 0.0
  %360 = vmatpush1.msra.mxu0 %v145
  %361 = vmatprep.subr.mxu0 0.0
  %362 = vmatpush1.msra.mxu0 %v146
  %363 = vmatprep.subr.mxu0 0.0
  %364 = vmatpush1.msra.mxu0 %v147
  %365 = vmatprep.subr.mxu0 0.0
  %366 = vmatpush1.msra.mxu0 %v148
  %367 = vmatprep.subr.mxu0 0.0
  %368 = vmatpush1.msra.mxu0 %v149
  %369 = vmatprep.subr.mxu0 0.0
  %370 = vmatpush1.msra.mxu0 %v150
  %371 = vmatprep.subr.mxu0 0.0
  %372 = vmatpush1.msra.mxu0 %v151
  %373 = vmatprep.subr.mxu0 0.0
  %374 = vmatpush1.msra.mxu0 %v152
  %375 = vmatprep.subr.mxu0 0.0
  %376 = vmatpush1.msra.mxu0 %v153
  %377 = vmatprep.subr.mxu0 0.0
  %378 = vmatpush1.msra.mxu0 %v154
  %379 = vmatprep.subr.mxu0 0.0
  %380 = vmatpush1.msra.mxu0 %v155
  %381 = vmatprep.subr.mxu0 0.0
  %382 = vmatpush1.msra.mxu0 %v156
  %383 = vmatprep.subr.mxu0 0.0
  %384 = vmatpush1.msra.mxu0 %v157
  %385 = vmatprep.subr.mxu0 0.0
  %386 = vmatpush1.msra.mxu0 %v158
  %387 = vmatprep.subr.mxu0 0.0
  %388 = vmatpush1.msra.mxu0 %v159
  %389 = vmatprep.subr.mxu0 0.0
  %390 = vmatpush1.msra.mxu0 %v160
  %391 = vmatprep.subr.mxu0 0.0
  %392 = vmatpush1.msra.mxu0 %v161
  %393 = vmatprep.subr.mxu0 0.0
  %394 = vmatpush1.msra.mxu0 %v162
  %395 = vmatprep.subr.mxu0 0.0
  %396 = vmatpush1.msra.mxu0 %v163
  %397 = vmatprep.subr.mxu0 0.0
  %398 = vmatpush1.msra.mxu0 %v164
  %399 = vmatprep.subr.mxu0 0.0
  %400 = vmatpush1.msra.mxu0 %v165
  %401 = vmatprep.subr.mxu0 0.0
  %402 = vmatpush1.msra.mxu0 %v166
  %403 = vmatprep.subr.mxu0 0.0
  %404 = vmatpush1.msra.mxu0 %v167
  %405 = vmatprep.mubr.f32.mxu0 %v69
  %406 = vmatmul.mubr.f32.gmra.mrb[0].mxu0 %v68
  %v407 = vpop.f32.mrb[0].mxu0
  %v408 = vadd.f32 %v338, %v407
  %v409 = vpop.f32.mrb[0].mxu0
  %410 = vdwg.mxu0
  %411 = vmatprep.subr.mxu0 0.0
  %412 = vmatpush1.msra.mxu0 %v168
  %413 = vmatprep.subr.mxu0 0.0
  %414 = vmatpush1.msra.mxu0 %v169
  %415 = vmatprep.subr.mxu0 0.0
  %416 = vmatpush1.msra.mxu0 %v170
  %417 = vmatprep.subr.mxu0 0.0
  %418 = vmatpush1.msra.mxu0 %v171
  %419 = vmatprep.subr.mxu0 0.0
  %420 = vmatpush1.msra.mxu0 %v172
  %421 = vmatprep.subr.mxu0 0.0
  %422 = vmatpush1.msra.mxu0 %v173
  %423 = vmatprep.subr.mxu0 0.0
  %424 = vmatpush1.msra.mxu0 %v174
  %425 = vmatprep.subr.mxu0 0.0
  %426 = vmatpush1.msra.mxu0 %v175
  %427 = vmatprep.subr.mxu0 0.0
  %428 = vmatpush1.msra.mxu0 %v176
  %429 = vmatprep.subr.mxu0 0.0
  %430 = vmatpush1.msra.mxu0 %v177
  %431 = vmatprep.subr.mxu0 0.0
  %432 = vmatpush1.msra.mxu0 %v178
  %433 = vmatprep.subr.mxu0 0.0
  %434 = vmatpush1.msra.mxu0 %v179
  %435 = vmatprep.subr.mxu0 0.0
  %436 = vmatpush1.msra.mxu0 %v180
  %437 = vmatprep.subr.mxu0 0.0
  %438 = vmatpush1.msra.mxu0 %v181
  %439 = vmatprep.subr.mxu0 0.0
  %440 = vmatpush1.msra.mxu0 %v182
  %441 = vmatprep.subr.mxu0 0.0
  %442 = vmatpush1.msra.mxu0 %v183
  %443 = vmatprep.subr.mxu0 0.0
  %444 = vmatpush1.msra.mxu0 %v184
  %445 = vmatprep.subr.mxu0 0.0
  %446 = vmatpush1.msra.mxu0 %v185
  %447 = vmatprep.subr.mxu0 0.0
  %448 = vmatpush1.msra.mxu0 %v186
  %449 = vmatprep.subr.mxu0 0.0
  %450 = vmatpush1.msra.mxu0 %v187
  %451 = vmatprep.subr.mxu0 0.0
  %452 = vmatpush1.msra.mxu0 %v188
  %453 = vmatprep.subr.mxu0 0.0
  %454 = vmatpush1.msra.mxu0 %v189
  %455 = vmatprep.subr.mxu0 0.0
  %456 = vmatpush1.msra.mxu0 %v190
  %457 = vmatprep.subr.mxu0 0.0
  %458 = vmatpush1.msra.mxu0 %v191
  %459 = vmatprep.subr.mxu0 0.0
  %460 = vmatpush1.msra.mxu0 %v192
  %461 = vmatprep.subr.mxu0 0.0
  %462 = vmatpush1.msra.mxu0 %v193
  %463 = vmatprep.subr.mxu0 0.0
  %464 = vmatpush1.msra.mxu0 %v194
  %465 = vmatprep.subr.mxu0 0.0
  %466 = vmatpush1.msra.mxu0 %v195
  %467 = vmatprep.subr.mxu0 0.0
  %468 = vmatpush1.msra.mxu0 %v196
  %469 = vmatprep.subr.mxu0 0.0
  %470 = vmatpush1.msra.mxu0 %v197
  %471 = vmatprep.subr.mxu0 0.0
  %472 = vmatpush1.msra.mxu0 %v198
  %473 = vmatprep.subr.mxu0 0.0
  %474 = vmatpush1.msra.mxu0 %v199
  %475 = vmatprep.mubr.f32.mxu0 %v71
  %476 = vmatmul.mubr.f32.gmra.mrb[0].mxu0 %v70
  %v477 = vpop.f32.mrb[0].mxu0
  %v478 = vadd.f32 %v408, %v477
  %v479 = vpop.f32.mrb[0].mxu0
  %480 = vdwg.mxu0
  %v481 = vtanh.pop %v478
  %v482 = vmul.f32 %v481, %v481
  %v483 = vsub.f32 1.0, %v482
  %v485 = vlaneseq
  %v486 = vshrl.u32 %v485, 7
  %v487 = vsub.s32 0, %v486
  %v488 = vrot.slane %v200, %v487
  %v490 = vmul.f32 %v483, %v488
  %vm491 = vcmask 261120
  %v493 = vsel %vm491, %v490, 0
  %v496 = vsel %vm491, %v72, 0
  %v499 = vsel %vm491, %v73, 0
  %v502 = vsel %vm491, %v74, 0
  %v505 = vsel %vm491, %v75, 0
  %v508 = vsel %vm491, %v76, 0
  %v511 = vsel %vm491, %v77, 0
  %v514 = vsel %vm491, %v78, 0
  %v517 = vsel %vm491, %v79, 0
  %v520 = vsel %vm491, %v80, 0
  %v523 = vsel %vm491, %v81, 0
  %v526 = vsel %vm491, %v82, 0
  %v529 = vsel %vm491, %v83, 0
  %v532 = vsel %vm491, %v84, 0
  %v535 = vsel %vm491, %v85, 0
  %v538 = vsel %vm491, %v86, 0
  %v541 = vsel %vm491, %v87, 0
  %v544 = vsel %vm491, %v88, 0
  %v547 = vsel %vm491, %v89, 0
  %v550 = vsel %vm491, %v90, 0
  %v553 = vsel %vm491, %v91, 0
  %v556 = vsel %vm491, %v92, 0
  %v559 = vsel %vm491, %v93, 0
  %v562 = vsel %vm491, %v94, 0
  %v565 = vsel %vm491, %v95, 0
  %v568 = vsel %vm491, %v96, 0
  %v571 = vsel %vm491, %v97, 0
  %v574 = vsel %vm491, %v98, 0
  %v577 = vsel %vm491, %v99, 0
  %v580 = vsel %vm491, %v100, 0
  %v583 = vsel %vm491, %v101, 0
  %v586 = vsel %vm491, %v102, 0
  %v589 = vsel %vm491, %v103, 0
  %v592 = vsel %vm491, %v104, 0
  %v595 = vsel %vm491, %v105, 0
  %v598 = vsel %vm491, %v106, 0
  %v601 = vsel %vm491, %v107, 0
  %v604 = vsel %vm491, %v108, 0
  %v607 = vsel %vm491, %v109, 0
  %v610 = vsel %vm491, %v110, 0
  %v613 = vsel %vm491, %v111, 0
  %v616 = vsel %vm491, %v112, 0
  %v619 = vsel %vm491, %v113, 0
  %v622 = vsel %vm491, %v114, 0
  %v625 = vsel %vm491, %v115, 0
  %v628 = vsel %vm491, %v116, 0
  %v631 = vsel %vm491, %v117, 0
  %v634 = vsel %vm491, %v118, 0
  %v637 = vsel %vm491, %v119, 0
  %v640 = vsel %vm491, %v120, 0
  %v643 = vsel %vm491, %v121, 0
  %v646 = vsel %vm491, %v122, 0
  %v649 = vsel %vm491, %v123, 0
  %v652 = vsel %vm491, %v124, 0
  %v655 = vsel %vm491, %v125, 0
  %v658 = vsel %vm491, %v126, 0
  %v661 = vsel %vm491, %v127, 0
  %v664 = vsel %vm491, %v128, 0
  %v667 = vsel %vm491, %v129, 0
  %v670 = vsel %vm491, %v130, 0
  %v673 = vsel %vm491, %v131, 0
  %v676 = vsel %vm491, %v132, 0
  %v679 = vsel %vm491, %v133, 0
  %v682 = vsel %vm491, %v134, 0
  %v685 = vsel %vm491, %v135, 0
  %v688 = vsel %vm491, %v136, 0
  %v691 = vsel %vm491, %v137, 0
  %v694 = vsel %vm491, %v138, 0
  %v697 = vsel %vm491, %v139, 0
  %v700 = vsel %vm491, %v140, 0
  %v703 = vsel %vm491, %v141, 0
  %v706 = vsel %vm491, %v142, 0
  %v709 = vsel %vm491, %v143, 0
  %v712 = vsel %vm491, %v144, 0
  %v715 = vsel %vm491, %v145, 0
  %v718 = vsel %vm491, %v146, 0
  %v721 = vsel %vm491, %v147, 0
  %v724 = vsel %vm491, %v148, 0
  %v727 = vsel %vm491, %v149, 0
  %v730 = vsel %vm491, %v150, 0
  %v733 = vsel %vm491, %v151, 0
  %v736 = vsel %vm491, %v152, 0
  %v739 = vsel %vm491, %v153, 0
  %v742 = vsel %vm491, %v154, 0
  %v745 = vsel %vm491, %v155, 0
  %v748 = vsel %vm491, %v156, 0
  %v751 = vsel %vm491, %v157, 0
  %v754 = vsel %vm491, %v158, 0
  %v757 = vsel %vm491, %v159, 0
  %v760 = vsel %vm491, %v160, 0
  %v763 = vsel %vm491, %v161, 0
  %v766 = vsel %vm491, %v162, 0
  %v769 = vsel %vm491, %v163, 0
  %v772 = vsel %vm491, %v164, 0
  %v775 = vsel %vm491, %v165, 0
  %v778 = vsel %vm491, %v166, 0
  %v781 = vsel %vm491, %v167, 0
  %v784 = vsel %vm491, %v168, 0
  %v787 = vsel %vm491, %v169, 0
  %v790 = vsel %vm491, %v170, 0
  %v793 = vsel %vm491, %v171, 0
  %v796 = vsel %vm491, %v172, 0
  %v799 = vsel %vm491, %v173, 0
  %v802 = vsel %vm491, %v174, 0
  %v805 = vsel %vm491, %v175, 0
  %v808 = vsel %vm491, %v176, 0
  %v811 = vsel %vm491, %v177, 0
  %v814 = vsel %vm491, %v178, 0
  %v817 = vsel %vm491, %v179, 0
  %v820 = vsel %vm491, %v180, 0
  %v823 = vsel %vm491, %v181, 0
  %v826 = vsel %vm491, %v182, 0
  %v829 = vsel %vm491, %v183, 0
  %v832 = vsel %vm491, %v184, 0
  %v835 = vsel %vm491, %v185, 0
  %v838 = vsel %vm491, %v186, 0
  %v841 = vsel %vm491, %v187, 0
  %v844 = vsel %vm491, %v188, 0
  %v847 = vsel %vm491, %v189, 0
  %v850 = vsel %vm491, %v190, 0
  %v853 = vsel %vm491, %v191, 0
  %v856 = vsel %vm491, %v192, 0
  %v859 = vsel %vm491, %v193, 0
  %v862 = vsel %vm491, %v194, 0
  %v865 = vsel %vm491, %v195, 0
  %v868 = vsel %vm491, %v196, 0
  %v871 = vsel %vm491, %v197, 0
  %v874 = vsel %vm491, %v198, 0
  %v877 = vsel %vm491, %v199, 0
  %879 = vmatprep.subr.mxu0 0.0
  %880 = vmatpush1.xpose.msra.mxu0 %v496
  %881 = vmatprep.subr.mxu0 0.0
  %882 = vmatpush1.xpose.msra.mxu0 %v499
  %883 = vmatprep.subr.mxu0 0.0
  %884 = vmatpush1.xpose.msra.mxu0 %v502
  %885 = vmatprep.subr.mxu0 0.0
  %886 = vmatpush1.xpose.msra.mxu0 %v505
  %887 = vmatprep.subr.mxu0 0.0
  %888 = vmatpush1.xpose.msra.mxu0 %v508
  %889 = vmatprep.subr.mxu0 0.0
  %890 = vmatpush1.xpose.msra.mxu0 %v511
  %891 = vmatprep.subr.mxu0 0.0
  %892 = vmatpush1.xpose.msra.mxu0 %v514
  %893 = vmatprep.subr.mxu0 0.0
  %894 = vmatpush1.xpose.msra.mxu0 %v517
  %895 = vmatprep.subr.mxu0 0.0
  %896 = vmatpush1.xpose.msra.mxu0 %v520
  %897 = vmatprep.subr.mxu0 0.0
  %898 = vmatpush1.xpose.msra.mxu0 %v523
  %899 = vmatprep.subr.mxu0 0.0
  %900 = vmatpush1.xpose.msra.mxu0 %v526
  %901 = vmatprep.subr.mxu0 0.0
  %902 = vmatpush1.xpose.msra.mxu0 %v529
  %903 = vmatprep.subr.mxu0 0.0
  %904 = vmatpush1.xpose.msra.mxu0 %v532
  %905 = vmatprep.subr.mxu0 0.0
  %906 = vmatpush1.xpose.msra.mxu0 %v535
  %907 = vmatprep.subr.mxu0 0.0
  %908 = vmatpush1.xpose.msra.mxu0 %v538
  %909 = vmatprep.subr.mxu0 0.0
  %910 = vmatpush1.xpose.msra.mxu0 %v541
  %911 = vmatprep.subr.mxu0 0.0
  %912 = vmatpush1.xpose.msra.mxu0 %v544
  %913 = vmatprep.subr.mxu0 0.0
  %914 = vmatpush1.xpose.msra.mxu0 %v547
  %915 = vmatprep.subr.mxu0 0.0
  %916 = vmatpush1.xpose.msra.mxu0 %v550
  %917 = vmatprep.subr.mxu0 0.0
  %918 = vmatpush1.xpose.msra.mxu0 %v553
  %919 = vmatprep.subr.mxu0 0.0
  %920 = vmatpush1.xpose.msra.mxu0 %v556
  %921 = vmatprep.subr.mxu0 0.0
  %922 = vmatpush1.xpose.msra.mxu0 %v559
  %923 = vmatprep.subr.mxu0 0.0
  %924 = vmatpush1.xpose.msra.mxu0 %v562
  %925 = vmatprep.subr.mxu0 0.0
  %926 = vmatpush1.xpose.msra.mxu0 %v565
  %927 = vmatprep.subr.mxu0 0.0
  %928 = vmatpush1.xpose.msra.mxu0 %v568
  %929 = vmatprep.subr.mxu0 0.0
  %930 = vmatpush1.xpose.msra.mxu0 %v571
  %931 = vmatprep.subr.mxu0 0.0
  %932 = vmatpush1.xpose.msra.mxu0 %v574
  %933 = vmatprep.subr.mxu0 0.0
  %934 = vmatpush1.xpose.msra.mxu0 %v577
  %935 = vmatprep.subr.mxu0 0.0
  %936 = vmatpush1.xpose.msra.mxu0 %v580
  %937 = vmatprep.subr.mxu0 0.0
  %938 = vmatpush1.xpose.msra.mxu0 %v583
  %939 = vmatprep.subr.mxu0 0.0
  %940 = vmatpush1.xpose.msra.mxu0 %v586
  %941 = vmatprep.subr.mxu0 0.0
  %942 = vmatpush1.xpose.msra.mxu0 %v589
  %943 = vmatprep.mubr.f32.mxu0 0.0
  %944 = vmatmul.mubr.f32.gmra.mrb[0].mxu0 %v493
  %v945 = vpop.f32.mrb[0].mxu0
  %v946 = vadd.f32 0.0, %v945
  %v947 = vpop.f32.mrb[0].mxu0
  %v948 = vadd.f32 0.0, %v947
  %949 = vdwg.mxu0
  %950 = vmatprep.subr.mxu0 0.0
  %951 = vmatpush1.xpose.msra.mxu0 %v592
  %952 = vmatprep.subr.mxu0 0.0
  %953 = vmatpush1.xpose.msra.mxu0 %v595
  %954 = vmatprep.subr.mxu0 0.0
  %955 = vmatpush1.xpose.msra.mxu0 %v598
  %956 = vmatprep.subr.mxu0 0.0
  %957 = vmatpush1.xpose.msra.mxu0 %v601
  %958 = vmatprep.subr.mxu0 0.0
  %959 = vmatpush1.xpose.msra.mxu0 %v604
  %960 = vmatprep.subr.mxu0 0.0
  %961 = vmatpush1.xpose.msra.mxu0 %v607
  %962 = vmatprep.subr.mxu0 0.0
  %963 = vmatpush1.xpose.msra.mxu0 %v610
  %964 = vmatprep.subr.mxu0 0.0
  %965 = vmatpush1.xpose.msra.mxu0 %v613
  %966 = vmatprep.subr.mxu0 0.0
  %967 = vmatpush1.xpose.msra.mxu0 %v616
  %968 = vmatprep.subr.mxu0 0.0
  %969 = vmatpush1.xpose.msra.mxu0 %v619
  %970 = vmatprep.subr.mxu0 0.0
  %971 = vmatpush1.xpose.msra.mxu0 %v622
  %972 = vmatprep.subr.mxu0 0.0
  %973 = vmatpush1.xpose.msra.mxu0 %v625
  %974 = vmatprep.subr.mxu0 0.0
  %975 = vmatpush1.xpose.msra.mxu0 %v628
  %976 = vmatprep.subr.mxu0 0.0
  %977 = vmatpush1.xpose.msra.mxu0 %v631
  %978 = vmatprep.subr.mxu0 0.0
  %979 = vmatpush1.xpose.msra.mxu0 %v634
  %980 = vmatprep.subr.mxu0 0.0
  %981 = vmatpush1.xpose.msra.mxu0 %v637
  %982 = vmatprep.subr.mxu0 0.0
  %983 = vmatpush1.xpose.msra.mxu0 %v640
  %984 = vmatprep.subr.mxu0 0.0
  %985 = vmatpush1.xpose.msra.mxu0 %v643
  %986 = vmatprep.subr.mxu0 0.0
  %987 = vmatpush1.xpose.msra.mxu0 %v646
  %988 = vmatprep.subr.mxu0 0.0
  %989 = vmatpush1.xpose.msra.mxu0 %v649
  %990 = vmatprep.subr.mxu0 0.0
  %991 = vmatpush1.xpose.msra.mxu0 %v652
  %992 = vmatprep.subr.mxu0 0.0
  %993 = vmatpush1.xpose.msra.mxu0 %v655
  %994 = vmatprep.subr.mxu0 0.0
  %995 = vmatpush1.xpose.msra.mxu0 %v658
  %996 = vmatprep.subr.mxu0 0.0
  %997 = vmatpush1.xpose.msra.mxu0 %v661
  %998 = vmatprep.subr.mxu0 0.0
  %999 = vmatpush1.xpose.msra.mxu0 %v664
  %1000 = vmatprep.subr.mxu0 0.0
  %1001 = vmatpush1.xpose.msra.mxu0 %v667
  %1002 = vmatprep.subr.mxu0 0.0
  %1003 = vmatpush1.xpose.msra.mxu0 %v670
  %1004 = vmatprep.subr.mxu0 0.0
  %1005 = vmatpush1.xpose.msra.mxu0 %v673
  %1006 = vmatprep.subr.mxu0 0.0
  %1007 = vmatpush1.xpose.msra.mxu0 %v676
  %1008 = vmatprep.subr.mxu0 0.0
  %1009 = vmatpush1.xpose.msra.mxu0 %v679
  %1010 = vmatprep.subr.mxu0 0.0
  %1011 = vmatpush1.xpose.msra.mxu0 %v682
  %1012 = vmatprep.subr.mxu0 0.0
  %1013 = vmatpush1.xpose.msra.mxu0 %v685
  %1014 = vmatprep.mubr.f32.mxu0 0.0
  %1015 = vmatmul.mubr.f32.gmra.mrb[0].mxu0 %v493
  %v1016 = vpop.f32.mrb[0].mxu0
  %v1017 = vadd.f32 0.0, %v1016
  %v1018 = vpop.f32.mrb[0].mxu0
  %v1019 = vadd.f32 0.0, %v1018
  %1020 = vdwg.mxu0
  %1021 = vmatprep.subr.mxu0 0.0
  %1022 = vmatpush1.xpose.msra.mxu0 %v688
  %1023 = vmatprep.subr.mxu0 0.0
  %1024 = vmatpush1.xpose.msra.mxu0 %v691
  %1025 = vmatprep.subr.mxu0 0.0
  %1026 = vmatpush1.xpose.msra.mxu0 %v694
  %1027 = vmatprep.subr.mxu0 0.0
  %1028 = vmatpush1.xpose.msra.mxu0 %v697
  %1029 = vmatprep.subr.mxu0 0.0
  %1030 = vmatpush1.xpose.msra.mxu0 %v700
  %1031 = vmatprep.subr.mxu0 0.0
  %1032 = vmatpush1.xpose.msra.mxu0 %v703
  %1033 = vmatprep.subr.mxu0 0.0
  %1034 = vmatpush1.xpose.msra.mxu0 %v706
  %1035 = vmatprep.subr.mxu0 0.0
  %1036 = vmatpush1.xpose.msra.mxu0 %v709
  %1037 = vmatprep.subr.mxu0 0.0
  %1038 = vmatpush1.xpose.msra.mxu0 %v712
  %1039 = vmatprep.subr.mxu0 0.0
  %1040 = vmatpush1.xpose.msra.mxu0 %v715
  %1041 = vmatprep.subr.mxu0 0.0
  %1042 = vmatpush1.xpose.msra.mxu0 %v718
  %1043 = vmatprep.subr.mxu0 0.0
  %1044 = vmatpush1.xpose.msra.mxu0 %v721
  %1045 = vmatprep.subr.mxu0 0.0
  %1046 = vmatpush1.xpose.msra.mxu0 %v724
  %1047 = vmatprep.subr.mxu0 0.0
  %1048 = vmatpush1.xpose.msra.mxu0 %v727
  %1049 = vmatprep.subr.mxu0 0.0
  %1050 = vmatpush1.xpose.msra.mxu0 %v730
  %1051 = vmatprep.subr.mxu0 0.0
  %1052 = vmatpush1.xpose.msra.mxu0 %v733
  %1053 = vmatprep.subr.mxu0 0.0
  %1054 = vmatpush1.xpose.msra.mxu0 %v736
  %1055 = vmatprep.subr.mxu0 0.0
  %1056 = vmatpush1.xpose.msra.mxu0 %v739
  %1057 = vmatprep.subr.mxu0 0.0
  %1058 = vmatpush1.xpose.msra.mxu0 %v742
  %1059 = vmatprep.subr.mxu0 0.0
  %1060 = vmatpush1.xpose.msra.mxu0 %v745
  %1061 = vmatprep.subr.mxu0 0.0
  %1062 = vmatpush1.xpose.msra.mxu0 %v748
  %1063 = vmatprep.subr.mxu0 0.0
  %1064 = vmatpush1.xpose.msra.mxu0 %v751
  %1065 = vmatprep.subr.mxu0 0.0
  %1066 = vmatpush1.xpose.msra.mxu0 %v754
  %1067 = vmatprep.subr.mxu0 0.0
  %1068 = vmatpush1.xpose.msra.mxu0 %v757
  %1069 = vmatprep.subr.mxu0 0.0
  %1070 = vmatpush1.xpose.msra.mxu0 %v760
  %1071 = vmatprep.subr.mxu0 0.0
  %1072 = vmatpush1.xpose.msra.mxu0 %v763
  %1073 = vmatprep.subr.mxu0 0.0
  %1074 = vmatpush1.xpose.msra.mxu0 %v766
  %1075 = vmatprep.subr.mxu0 0.0
  %1076 = vmatpush1.xpose.msra.mxu0 %v769
  %1077 = vmatprep.subr.mxu0 0.0
  %1078 = vmatpush1.xpose.msra.mxu0 %v772
  %1079 = vmatprep.subr.mxu0 0.0
  %1080 = vmatpush1.xpose.msra.mxu0 %v775
  %1081 = vmatprep.subr.mxu0 0.0
  %1082 = vmatpush1.xpose.msra.mxu0 %v778
  %1083 = vmatprep.subr.mxu0 0.0
  %1084 = vmatpush1.xpose.msra.mxu0 %v781
  %1085 = vmatprep.mubr.f32.mxu0 0.0
  %1086 = vmatmul.mubr.f32.gmra.mrb[0].mxu0 %v493
  %v1087 = vpop.f32.mrb[0].mxu0
  %v1088 = vadd.f32 0.0, %v1087
  %v1089 = vpop.f32.mrb[0].mxu0
  %v1090 = vadd.f32 0.0, %v1089
  %1091 = vdwg.mxu0
  %1092 = vmatprep.subr.mxu0 0.0
  %1093 = vmatpush1.xpose.msra.mxu0 %v784
  %1094 = vmatprep.subr.mxu0 0.0
  %1095 = vmatpush1.xpose.msra.mxu0 %v787
  %1096 = vmatprep.subr.mxu0 0.0
  %1097 = vmatpush1.xpose.msra.mxu0 %v790
  %1098 = vmatprep.subr.mxu0 0.0
  %1099 = vmatpush1.xpose.msra.mxu0 %v793
  %1100 = vmatprep.subr.mxu0 0.0
  %1101 = vmatpush1.xpose.msra.mxu0 %v796
  %1102 = vmatprep.subr.mxu0 0.0
  %1103 = vmatpush1.xpose.msra.mxu0 %v799
  %1104 = vmatprep.subr.mxu0 0.0
  %1105 = vmatpush1.xpose.msra.mxu0 %v802
  %1106 = vmatprep.subr.mxu0 0.0
  %1107 = vmatpush1.xpose.msra.mxu0 %v805
  %1108 = vmatprep.subr.mxu0 0.0
  %1109 = vmatpush1.xpose.msra.mxu0 %v808
  %1110 = vmatprep.subr.mxu0 0.0
  %1111 = vmatpush1.xpose.msra.mxu0 %v811
  %1112 = vmatprep.subr.mxu0 0.0
  %1113 = vmatpush1.xpose.msra.mxu0 %v814
  %1114 = vmatprep.subr.mxu0 0.0
  %1115 = vmatpush1.xpose.msra.mxu0 %v817
  %1116 = vmatprep.subr.mxu0 0.0
  %1117 = vmatpush1.xpose.msra.mxu0 %v820
  %1118 = vmatprep.subr.mxu0 0.0
  %1119 = vmatpush1.xpose.msra.mxu0 %v823
  %1120 = vmatprep.subr.mxu0 0.0
  %1121 = vmatpush1.xpose.msra.mxu0 %v826
  %1122 = vmatprep.subr.mxu0 0.0
  %1123 = vmatpush1.xpose.msra.mxu0 %v829
  %1124 = vmatprep.subr.mxu0 0.0
  %1125 = vmatpush1.xpose.msra.mxu0 %v832
  %1126 = vmatprep.subr.mxu0 0.0
  %1127 = vmatpush1.xpose.msra.mxu0 %v835
  %1128 = vmatprep.subr.mxu0 0.0
  %1129 = vmatpush1.xpose.msra.mxu0 %v838
  %1130 = vmatprep.subr.mxu0 0.0
  %1131 = vmatpush1.xpose.msra.mxu0 %v841
  %1132 = vmatprep.subr.mxu0 0.0
  %1133 = vmatpush1.xpose.msra.mxu0 %v844
  %1134 = vmatprep.subr.mxu0 0.0
  %1135 = vmatpush1.xpose.msra.mxu0 %v847
  %1136 = vmatprep.subr.mxu0 0.0
  %1137 = vmatpush1.xpose.msra.mxu0 %v850
  %1138 = vmatprep.subr.mxu0 0.0
  %1139 = vmatpush1.xpose.msra.mxu0 %v853
  %1140 = vmatprep.subr.mxu0 0.0
  %1141 = vmatpush1.xpose.msra.mxu0 %v856
  %1142 = vmatprep.subr.mxu0 0.0
  %1143 = vmatpush1.xpose.msra.mxu0 %v859
  %1144 = vmatprep.subr.mxu0 0.0
  %1145 = vmatpush1.xpose.msra.mxu0 %v862
  %1146 = vmatprep.subr.mxu0 0.0
  %1147 = vmatpush1.xpose.msra.mxu0 %v865
  %1148 = vmatprep.subr.mxu0 0.0
  %1149 = vmatpush1.xpose.msra.mxu0 %v868
  %1150 = vmatprep.subr.mxu0 0.0
  %1151 = vmatpush1.xpose.msra.mxu0 %v871
  %1152 = vmatprep.subr.mxu0 0.0
  %1153 = vmatpush1.xpose.msra.mxu0 %v874
  %1154 = vmatprep.subr.mxu0 0.0
  %1155 = vmatpush1.xpose.msra.mxu0 %v877
  %1156 = vmatprep.mubr.f32.mxu0 0.0
  %1157 = vmatmul.mubr.f32.gmra.mrb[0].mxu0 %v493
  %v1158 = vpop.f32.mrb[0].mxu0
  %v1159 = vadd.f32 0.0, %v1158
  %v1160 = vpop.f32.mrb[0].mxu0
  %v1161 = vadd.f32 0.0, %v1160
  %1162 = vdwg.mxu0
  %v1163 = vmul.f32 %v946, %v946
  %v1164 = vmul.f32 %v948, %v948
  %v1165 = vadd.f32 %v1163, 0.0
  %v1166 = vadd.f32 %v1164, 0.0
  %v1167 = vmul.f32 %v1017, %v1017
  %v1168 = vmul.f32 %v1019, %v1019
  %v1169 = vadd.f32 %v1165, %v1167
  %v1170 = vadd.f32 %v1166, %v1168
  %v1171 = vmul.f32 %v1088, %v1088
  %v1172 = vmul.f32 %v1090, %v1090
  %v1173 = vadd.f32 %v1169, %v1171
  %v1174 = vadd.f32 %v1170, %v1172
  %v1175 = vmul.f32 %v1159, %v1159
  %v1176 = vmul.f32 %v1161, %v1161
  %v1177 = vadd.f32 %v1173, %v1175
  %v1178 = vadd.f32 %v1174, %v1176
  %v1179 = vrsqrt.pop %v1177
  %v1180 = vmul.f32 %v1177, %v1179
  %vm1181 = vcmp.eq.f32.partialorder %v1177, inf
  %v1182 = vsel %vm1181, %v1177, %v1180
  %vm1183 = vcmp.eq.f32.partialorder %v1177, 0.0
  %v1184 = vand.u32 %v1177, 2147483648
  %v1185 = vsel %vm1183, %v1184, %v1182
  %v1186 = vrsqrt.pop %v1178
  %v1187 = vmul.f32 %v1178, %v1186
  %vm1188 = vcmp.eq.f32.partialorder %v1178, inf
  %v1189 = vsel %vm1188, %v1178, %v1187
  %vm1190 = vcmp.eq.f32.partialorder %v1178, 0.0
  %v1191 = vand.u32 %v1178, 2147483648
  %v1192 = vsel %vm1190, %v1191, %v1189
  %v1193 = vsub.f32 %v1185, 1.0
  %v1194 = vsub.f32 %v1192, 1.0
  %v1195 = vmul.f32 %v1193, %v1193
  %v1196 = vmul.f32 %v1194, %v1194
  %v1197 = vadd.f32 %v1195, %v1196
  %1198 = vadd.xlane.f32.xlu0 %v1197
  %v1199 = vpop.xlane.xlu0 %1198
  %vm1200 = vcmask 7168
  %1201 = vst.msk [vmem:[%s5] sm:$0xff] %vm1200, %v1199
  // Predicated region
  $region22: #{tpu_custom_call.1} parent=0 // pred_check
    _
  $region23: #{tpu_custom_call.1} parent=0 // pred_check_branch
    %1203 = sbr.rel (0) target = $region25
  $region24: #{tpu_custom_call.1} parent=0 // pred_region
    _
  $region25: #{tpu_custom_call.1} parent=0 // pred_fallthru
    _
  // Predicated region
  $region26: #{tpu_custom_call.1} parent=0 // pred_check
    _
  $region27: #{tpu_custom_call.1} parent=0 // pred_check_branch
    %1205 = sbr.rel (0) target = $region29
  $region28: #{tpu_custom_call.1} parent=0 // pred_region
    _
  $region29: #{tpu_custom_call.1} parent=0 // pred_fallthru
    _

</llo_original>
